<compile_context>
chip_gen: v7x
topology: tpu7x:2x2x1
jax: 0.10.0
libtpu: 0.0.40
codegen_flags: <defaults>
</compile_context>

<pallas_src>
import jax
import jax.numpy as jnp
import numpy as np
from jax.experimental import pallas as pl
from jax.experimental.pallas import tpu as pltpu


def _round_up(n, m):
    return (n + m - 1) // m * m


def _cdiv(a, b):
    return -(-a // b)


def _elu(x):
    # ELU(alpha=1): x for x > 0, else exp(x) - 1.  One EUP transcendental per
    # element (single EUP slot => this is the elementwise bottleneck at small
    # H).  Clamping keeps exp() out of the overflow range; the x<=0 branch's
    # cancellation near 0 is benign in f32.
    xn = jnp.minimum(x, 0.0)
    return jnp.where(x > 0.0, x, jnp.exp(xn) - 1.0)


def yode_kernel(x_ref, w1_ref, b1_ref, w2_ref, b2_ref, w3_ref, b3_ref, o_ref):
    cdt = w1_ref.dtype                      # MXU input dtype (bf16 by default)
    # x arrives already cast to cdt by the wrapper (halves its DMA + VMEM).
    h = jnp.dot(x_ref[...], w1_ref[...], preferred_element_type=jnp.float32)
    h = _elu(h + b1_ref[...])
    h = jnp.dot(h.astype(cdt), w2_ref[...], preferred_element_type=jnp.float32)
    h = _elu(h + b2_ref[...])
    h = jnp.dot(h.astype(cdt), w3_ref[...], preferred_element_type=jnp.float32)
    o_ref[...] = (h + b3_ref[...]).astype(o_ref.dtype)


def _vmem_capacity_bytes():
    try:
        return int(pltpu.get_tpu_info().vmem_capacity_bytes)
    except Exception:
        return 64 << 20                     # conservative: v7x per-TensorCore


def _supports_single_buffer():
    if not hasattr(pl, "Buffered"):
        return False
    try:
        pl.Buffered(1)
        return True
    except Exception:
        return False


def _choose_tiling(B, H_pad, block_b=None):
    if block_b is None:
        # Big batch tiles when weights are small (HBM-roofline / per-step
        # overhead regime), smaller tiles when weights are large (VMEM room).
        if H_pad <= 1024:
            block_b = 1024
        elif H_pad <= 2048:
            block_b = 512
        else:
            block_b = 256
    n = _cdiv(B, block_b)
    # Prefer an even grid length >= 2 so the "parallel" batch axis can shard
    # across v7x's two TensorCores with balanced load (only when each tile
    # still keeps at least a full sublane of real rows).
    if n == 1 and B >= 16:
        n = 2
    elif n > 1 and n % 2 == 1:
        n += 1
    TB = _round_up(_cdiv(B, n), 8)          # near-divisor => <8 padded rows/tile
    n = _cdiv(B, TB)
    return TB, n * TB


def prepare_params(params, *, compute_dtype=jnp.bfloat16):
    """Pad weights to (H_pad, H_pad), biases to (1, H_pad), cast weights to the
    MXU dtype.  Call ONCE and reuse the result across solver steps."""
    H = params["w1"].shape[0]
    H_pad = _round_up(H, 128)               # lane-dense last dim

    def prep_w(w):
        return jnp.pad(w, ((0, H_pad - H), (0, H_pad - H))).astype(compute_dtype)

    def prep_b(b):
        return jnp.pad(jnp.asarray(b).reshape(1, -1),
                       ((0, 0), (0, H_pad - H))).astype(jnp.float32)

    return {
        "H": H, "H_pad": H_pad, "compute_dtype": compute_dtype,
        "w1": prep_w(params["w1"]), "b1": prep_b(params["b1"]),
        "w2": prep_w(params["w2"]), "b2": prep_b(params["b2"]),
        "w3": prep_w(params["w3"]), "b3": prep_b(params["b3"]),
    }


def _yode_forward(x, p, *, block_b=None):
    B, H = x.shape
    assert H == p["H"], "x feature dim does not match prepared params"
    H_pad = p["H_pad"]
    cdt = p["compute_dtype"]
    comp_isz = np.dtype(cdt).itemsize

    TB, B_pad = _choose_tiling(B, H_pad, block_b)
    grid = (B_pad // TB,)

    # Pad (zero rows/cols stay harmless through all layers and are sliced off)
    # and cast x to the MXU dtype once at the boundary.
    xp = jnp.pad(x, ((0, B_pad - B), (0, H_pad - H))).astype(cdt)

    out_shape = jax.ShapeDtypeStruct((B_pad, H_pad), x.dtype)
    x_spec = pl.BlockSpec((TB, H_pad), lambda i: (i, 0))
    out_spec = pl.BlockSpec((TB, H_pad), lambda i: (i, 0))

    vmem_cap = _vmem_capacity_bytes()

    cost = pl.CostEstimate(
        flops=2 * 3 * B_pad * H_pad * H_pad,
        transcendentals=2 * B_pad * H_pad,            # one exp/elem per ELU
        bytes_accessed=int(3 * H_pad * H_pad * comp_isz + 3 * H_pad * 4
                           + B_pad * H_pad * (comp_isz + x.dtype.itemsize)),
    )

    def run(single_buffer):
        if single_buffer:
            # Constant block index => weights DMA'd once and kept resident;
            # single-buffering drops the useless second pipeline buffer.
            w_spec = pl.BlockSpec((H_pad, H_pad), lambda i: (0, 0),
                                  pipeline_mode=pl.Buffered(1))
            b_spec = pl.BlockSpec((1, H_pad), lambda i: (0, 0),
                                  pipeline_mode=pl.Buffered(1))
            w_bufs = 1
        else:
            w_spec = pl.BlockSpec((H_pad, H_pad), lambda i: (0, 0))
            b_spec = pl.BlockSpec((1, H_pad), lambda i: (0, 0))
            w_bufs = 2

        wt_bytes = w_bufs * (3 * H_pad * H_pad * comp_isz + 3 * 8 * H_pad * 4)
        io_bytes = 2 * TB * H_pad * comp_isz + 2 * TB * H_pad * 4  # x(bf16)+out(f32), dbl-buf
        tmp_bytes = 3 * TB * H_pad * 4                             # live f32 h + cast + next acc
        needed = wt_bytes + io_bytes + tmp_bytes + (2 << 20)
        # TODO(synk): once `needed` exceeds the chip capacity (~H_pad >= 3K on
        # v7x with bf16 weights), stop keeping all three weights resident:
        # tile the output-feature dim with an "arbitrary" grid axis + f32
        # accumulator scratch, or split into per-layer pallas_calls (and
        # consider fp8 weights on v7x, which has no int MXU path).
        vmem_limit = int(min(max(needed, 32 << 20), vmem_cap - (6 << 20)))

        return pl.pallas_call(
            yode_kernel,
            out_shape=out_shape,
            grid=grid,
            in_specs=[x_spec, w_spec, b_spec, w_spec, b_spec, w_spec, b_spec],
            out_specs=out_spec,
            compiler_params=pltpu.CompilerParams(
                dimension_semantics=("parallel",),   # megacore sharding on v7x
                vmem_limit_bytes=vmem_limit,
            ),
            cost_estimate=cost,
        )(xp, p["w1"], p["b1"], p["w2"], p["b2"], p["w3"], p["b3"])

    if _supports_single_buffer():
        try:
            out_padded = run(True)
        except Exception:
            # Older/newer pipeline_mode API mismatch: fall back to the
            # previously-validated double-buffered configuration.
            out_padded = run(False)
    else:
        out_padded = run(False)

    return out_padded[:B, :H]


def yode_func(x, params, *, compute_dtype=jnp.bfloat16, block_b=None):
    """Forward pass of YODEfunc.  `params` may be either the raw dict from
    init_params (pad/cast done on the fly) or the output of prepare_params
    (preferred for repeated ODE-solver calls)."""
    if isinstance(params, dict) and "H_pad" in params:
        prepped = params
    else:
        prepped = prepare_params(params, compute_dtype=compute_dtype)
    return _yode_forward(x, prepped, block_b=block_b)


def init_params(key, nhidden):
    """Deterministic init matching nn.Linear shapes (weights stored as (in, out))."""
    ks = jax.random.split(key, 6)
    bound = 1.0 / jnp.sqrt(nhidden)

    def u(k, shape):
        return jax.random.uniform(k, shape, jnp.float32, -bound, bound)

    return {
        "w1": u(ks[0], (nhidden, nhidden)),
        "b1": u(ks[1], (1, nhidden)),
        "w2": u(ks[2], (nhidden, nhidden)),
        "b2": u(ks[3], (1, nhidden)),
        "w3": u(ks[4], (nhidden, nhidden)),
        "b3": u(ks[5], (1, nhidden)),
    }


def yode_ref(x, params, *, compute_dtype=jnp.float32):
    """Pure-JAX reference mirroring the kernel's dtype path."""
    elu = lambda v: jnp.where(v > 0, v, jnp.expm1(jnp.minimum(v, 0.0)))

    def lin(h, w, b):
        return jnp.dot(h.astype(compute_dtype), w.astype(compute_dtype),
                       preferred_element_type=jnp.float32) + b

    h = elu(lin(x, params["w1"], params["b1"]))
    h = elu(lin(h, params["w2"], params["b2"]))
    return lin(h, params["w3"], params["b3"])


if __name__ == "__main__":
    key = jax.random.PRNGKey(0)
    k_param, k_x = jax.random.split(key)

    nhidden = 32
    batch = 8
    params = init_params(k_param, nhidden)
    x = jax.random.normal(k_x, (batch, nhidden), jnp.float32)

    # f32 weights: the documented parity point with the PyTorch module.
    out_f32 = jax.block_until_ready(yode_func(x, params, compute_dtype=jnp.float32))
    ref_f32 = yode_ref(x, params, compute_dtype=jnp.float32)
    assert out_f32.shape == (batch, nhidden)
    assert jnp.allclose(out_f32, ref_f32, atol=1e-4, rtol=1e-4), "f32 path mismatch"

    # Default bf16-weight fast path; weights prepared once (hoisted pad/cast)
    # and reused across calls, as an ODE solver would.
    prepped = prepare_params(params, compute_dtype=jnp.bfloat16)
    out_bf16 = jax.block_until_ready(yode_func(x, prepped))
    out_bf16_again = jax.block_until_ready(yode_func(x, prepped))
    ref_bf16 = yode_ref(x, params, compute_dtype=jnp.bfloat16)
    assert out_bf16.shape == (batch, nhidden)
    assert jnp.allclose(out_bf16, ref_bf16, atol=1e-2, rtol=1e-2), "bf16 path mismatch"
    assert jnp.allclose(out_bf16, out_bf16_again), "prepared-params reuse mismatch"

    print("KERNEL_OK")
</pallas_src>

<mosaic_0001>
module attributes {stable_mosaic.version = 11 : i64} {
  func.func @yode_kernel(%arg0: i32, %arg1: memref<8x128xf32, #tpu.memory_space<vmem>>, %arg2: memref<128x128xf32, #tpu.memory_space<vmem>>, %arg3: memref<1x128xf32, #tpu.memory_space<vmem>>, %arg4: memref<128x128xf32, #tpu.memory_space<vmem>>, %arg5: memref<1x128xf32, #tpu.memory_space<vmem>>, %arg6: memref<128x128xf32, #tpu.memory_space<vmem>>, %arg7: memref<1x128xf32, #tpu.memory_space<vmem>>, %arg8: memref<8x128xf32, #tpu.memory_space<vmem>>) attributes {dimension_semantics = [#tpu.dimension_semantics<parallel>], iteration_bounds = array<i64: 1>, scalar_prefetch = 0 : i64, scratch_operands = 0 : i64, tpu.core_type = #tpu.core_type<tc>, window_params = [{transform_indices = @transform_0, window_bounds = array<i64: 8, 128>}, {pipeline_mode = #tpu.pipeline_mode<synchronous>, transform_indices = @transform_1, window_bounds = array<i64: 128, 128>}, {pipeline_mode = #tpu.pipeline_mode<synchronous>, transform_indices = @transform_2, window_bounds = array<i64: 1, 128>}, {pipeline_mode = #tpu.pipeline_mode<synchronous>, transform_indices = @transform_3, window_bounds = array<i64: 128, 128>}, {pipeline_mode = #tpu.pipeline_mode<synchronous>, transform_indices = @transform_4, window_bounds = array<i64: 1, 128>}, {pipeline_mode = #tpu.pipeline_mode<synchronous>, transform_indices = @transform_5, window_bounds = array<i64: 128, 128>}, {pipeline_mode = #tpu.pipeline_mode<synchronous>, transform_indices = @transform_6, window_bounds = array<i64: 1, 128>}, {transform_indices = @transform_7, window_bounds = array<i64: 8, 128>}]} {
    %c0 = arith.constant 0 : index
    %c0_0 = arith.constant 0 : index
    %0 = vector.load %arg1[%c0, %c0_0] : memref<8x128xf32, #tpu.memory_space<vmem>>, vector<8x128xf32>
    %c0_1 = arith.constant 0 : index
    %c0_2 = arith.constant 0 : index
    %1 = vector.load %arg2[%c0_1, %c0_2] : memref<128x128xf32, #tpu.memory_space<vmem>>, vector<128x128xf32>
    %cst = arith.constant dense<0.000000e+00> : vector<8x128xf32>
    %2 = tpu.matmul %0, %1, %cst {dimension_numbers = #tpu.dot_dimension_numbers<[1], [0], [0], [1], [0, 0, 1, 1], [], []>} : vector<8x128xf32>, vector<128x128xf32>, vector<8x128xf32> -> vector<8x128xf32>
    %c0_3 = arith.constant 0 : index
    %c0_4 = arith.constant 0 : index
    %3 = vector.load %arg3[%c0_3, %c0_4] : memref<1x128xf32, #tpu.memory_space<vmem>>, vector<1x128xf32>
    %4 = vector.broadcast %3 : vector<1x128xf32> to vector<8x128xf32>
    %5 = arith.addf %2, %4 : vector<8x128xf32>
    %cst_5 = arith.constant 0.000000e+00 : f32
    %6 = vector.broadcast %cst_5 : f32 to vector<8x128xf32>
    %7 = arith.minimumf %5, %6 : vector<8x128xf32>
    %cst_6 = arith.constant 0.000000e+00 : f32
    %8 = vector.broadcast %cst_6 : f32 to vector<8x128xf32>
    %9 = arith.cmpf ogt, %5, %8 : vector<8x128xf32>
    %10 = math.exp %7 : vector<8x128xf32>
    %cst_7 = arith.constant 1.000000e+00 : f32
    %11 = vector.broadcast %cst_7 : f32 to vector<8x128xf32>
    %12 = arith.subf %10, %11 : vector<8x128xf32>
    %13 = arith.select %9, %5, %12 : vector<8x128xi1>, vector<8x128xf32>
    %c0_8 = arith.constant 0 : index
    %c0_9 = arith.constant 0 : index
    %14 = vector.load %arg4[%c0_8, %c0_9] : memref<128x128xf32, #tpu.memory_space<vmem>>, vector<128x128xf32>
    %cst_10 = arith.constant dense<0.000000e+00> : vector<8x128xf32>
    %15 = tpu.matmul %13, %14, %cst_10 {dimension_numbers = #tpu.dot_dimension_numbers<[1], [0], [0], [1], [0, 0, 1, 1], [], []>} : vector<8x128xf32>, vector<128x128xf32>, vector<8x128xf32> -> vector<8x128xf32>
    %c0_11 = arith.constant 0 : index
    %c0_12 = arith.constant 0 : index
    %16 = vector.load %arg5[%c0_11, %c0_12] : memref<1x128xf32, #tpu.memory_space<vmem>>, vector<1x128xf32>
    %17 = vector.broadcast %16 : vector<1x128xf32> to vector<8x128xf32>
    %18 = arith.addf %15, %17 : vector<8x128xf32>
    %cst_13 = arith.constant 0.000000e+00 : f32
    %19 = vector.broadcast %cst_13 : f32 to vector<8x128xf32>
    %20 = arith.minimumf %18, %19 : vector<8x128xf32>
    %cst_14 = arith.constant 0.000000e+00 : f32
    %21 = vector.broadcast %cst_14 : f32 to vector<8x128xf32>
    %22 = arith.cmpf ogt, %18, %21 : vector<8x128xf32>
    %23 = math.exp %20 : vector<8x128xf32>
    %cst_15 = arith.constant 1.000000e+00 : f32
    %24 = vector.broadcast %cst_15 : f32 to vector<8x128xf32>
    %25 = arith.subf %23, %24 : vector<8x128xf32>
    %26 = arith.select %22, %18, %25 : vector<8x128xi1>, vector<8x128xf32>
    %c0_16 = arith.constant 0 : index
    %c0_17 = arith.constant 0 : index
    %27 = vector.load %arg6[%c0_16, %c0_17] : memref<128x128xf32, #tpu.memory_space<vmem>>, vector<128x128xf32>
    %cst_18 = arith.constant dense<0.000000e+00> : vector<8x128xf32>
    %28 = tpu.matmul %26, %27, %cst_18 {dimension_numbers = #tpu.dot_dimension_numbers<[1], [0], [0], [1], [0, 0, 1, 1], [], []>} : vector<8x128xf32>, vector<128x128xf32>, vector<8x128xf32> -> vector<8x128xf32>
    %c0_19 = arith.constant 0 : index
    %c0_20 = arith.constant 0 : index
    %29 = vector.load %arg7[%c0_19, %c0_20] : memref<1x128xf32, #tpu.memory_space<vmem>>, vector<1x128xf32>
    %30 = vector.broadcast %29 : vector<1x128xf32> to vector<8x128xf32>
    %31 = arith.addf %28, %30 : vector<8x128xf32>
    %c0_21 = arith.constant 0 : index
    %c0_22 = arith.constant 0 : index
    %32 = vector.load %arg8[%c0_21, %c0_22] : memref<8x128xf32, #tpu.memory_space<vmem>>, vector<8x128xf32>
    tpu.vector_store %arg8[%c0_21, %c0_22], %31 {strides = array<i32>} : memref<8x128xf32, #tpu.memory_space<vmem>>, vector<8x128xf32>,
    return
  }
  func.func @transform_0(%arg0: i32) -> (i32, i32) {
    %c0_i32 = arith.constant 0 : i32
    %c0_i32_0 = arith.constant 0 : i32
    return %arg0, %c0_i32 : i32, i32
  }
  func.func @transform_1(%arg0: i32) -> (i32, i32) {
    %c0_i32 = arith.constant 0 : i32
    %c0_i32_0 = arith.constant 0 : i32
    %c0_i32_1 = arith.constant 0 : i32
    return %c0_i32, %c0_i32_0 : i32, i32
  }
  func.func @transform_2(%arg0: i32) -> (i32, i32) {
    %c0_i32 = arith.constant 0 : i32
    %c0_i32_0 = arith.constant 0 : i32
    %c0_i32_1 = arith.constant 0 : i32
    return %c0_i32, %c0_i32_0 : i32, i32
  }
  func.func @transform_3(%arg0: i32) -> (i32, i32) {
    %c0_i32 = arith.constant 0 : i32
    %c0_i32_0 = arith.constant 0 : i32
    %c0_i32_1 = arith.constant 0 : i32
    return %c0_i32, %c0_i32_0 : i32, i32
  }
  func.func @transform_4(%arg0: i32) -> (i32, i32) {
    %c0_i32 = arith.constant 0 : i32
    %c0_i32_0 = arith.constant 0 : i32
    %c0_i32_1 = arith.constant 0 : i32
    return %c0_i32, %c0_i32_0 : i32, i32
  }
  func.func @transform_5(%arg0: i32) -> (i32, i32) {
    %c0_i32 = arith.constant 0 : i32
    %c0_i32_0 = arith.constant 0 : i32
    %c0_i32_1 = arith.constant 0 : i32
    return %c0_i32, %c0_i32_0 : i32, i32
  }
  func.func @transform_6(%arg0: i32) -> (i32, i32) {
    %c0_i32 = arith.constant 0 : i32
    %c0_i32_0 = arith.constant 0 : i32
    %c0_i32_1 = arith.constant 0 : i32
    return %c0_i32, %c0_i32_0 : i32, i32
  }
  func.func @transform_7(%arg0: i32) -> (i32, i32) {
    %c0_i32 = arith.constant 0 : i32
    %c0_i32_0 = arith.constant 0 : i32
    return %arg0, %c0_i32 : i32, i32
  }
}

module attributes {stable_mosaic.version = 11 : i64} {
  func.func @yode_kernel(%arg0: i32, %arg1: memref<8x128xf32, #tpu.memory_space<vmem>>, %arg2: memref<128x128xf32, #tpu.memory_space<vmem>>, %arg3: memref<1x128xf32, #tpu.memory_space<vmem>>, %arg4: memref<128x128xf32, #tpu.memory_space<vmem>>, %arg5: memref<1x128xf32, #tpu.memory_space<vmem>>, %arg6: memref<128x128xf32, #tpu.memory_space<vmem>>, %arg7: memref<1x128xf32, #tpu.memory_space<vmem>>, %arg8: memref<8x128xf32, #tpu.memory_space<vmem>>) attributes {dimension_semantics = [#tpu.dimension_semantics<parallel>], iteration_bounds = array<i64: 1>, scalar_prefetch = 0 : i64, scratch_operands = 0 : i64, tpu.core_type = #tpu.core_type<tc>, window_params = [{transform_indices = @transform_0, window_bounds = array<i64: 8, 128>}, {pipeline_mode = #tpu.pipeline_mode<synchronous>, transform_indices = @transform_1, window_bounds = array<i64: 128, 128>}, {pipeline_mode = #tpu.pipeline_mode<synchronous>, transform_indices = @transform_2, window_bounds = array<i64: 1, 128>}, {pipeline_mode = #tpu.pipeline_mode<synchronous>, transform_indices = @transform_3, window_bounds = array<i64: 128, 128>}, {pipeline_mode = #tpu.pipeline_mode<synchronous>, transform_indices = @transform_4, window_bounds = array<i64: 1, 128>}, {pipeline_mode = #tpu.pipeline_mode<synchronous>, transform_indices = @transform_5, window_bounds = array<i64: 128, 128>}, {pipeline_mode = #tpu.pipeline_mode<synchronous>, transform_indices = @transform_6, window_bounds = array<i64: 1, 128>}, {transform_indices = @transform_7, window_bounds = array<i64: 8, 128>}]} {
    %c0 = arith.constant 0 : index
    %c0_0 = arith.constant 0 : index
    %0 = vector.load %arg1[%c0, %c0_0] : memref<8x128xf32, #tpu.memory_space<vmem>>, vector<8x128xf32>
    %c0_1 = arith.constant 0 : index
    %c0_2 = arith.constant 0 : index
    %1 = vector.load %arg2[%c0_1, %c0_2] : memref<128x128xf32, #tpu.memory_space<vmem>>, vector<128x128xf32>
    %cst = arith.constant dense<0.000000e+00> : vector<8x128xf32>
    %2 = tpu.matmul %0, %1, %cst {dimension_numbers = #tpu.dot_dimension_numbers<[1], [0], [0], [1], [0, 0, 1, 1], [], []>} : vector<8x128xf32>, vector<128x128xf32>, vector<8x128xf32> -> vector<8x128xf32>
    %c0_3 = arith.constant 0 : index
    %c0_4 = arith.constant 0 : index
    %3 = vector.load %arg3[%c0_3, %c0_4] : memref<1x128xf32, #tpu.memory_space<vmem>>, vector<1x128xf32>
    %4 = vector.broadcast %3 : vector<1x128xf32> to vector<8x128xf32>
    %5 = arith.addf %2, %4 : vector<8x128xf32>
    %cst_5 = arith.constant 0.000000e+00 : f32
    %6 = vector.broadcast %cst_5 : f32 to vector<8x128xf32>
    %7 = arith.minimumf %5, %6 : vector<8x128xf32>
    %cst_6 = arith.constant 0.000000e+00 : f32
    %8 = vector.broadcast %cst_6 : f32 to vector<8x128xf32>
    %9 = arith.cmpf ogt, %5, %8 : vector<8x128xf32>
    %10 = math.exp %7 : vector<8x128xf32>
    %cst_7 = arith.constant 1.000000e+00 : f32
    %11 = vector.broadcast %cst_7 : f32 to vector<8x128xf32>
    %12 = arith.subf %10, %11 : vector<8x128xf32>
    %13 = arith.select %9, %5, %12 : vector<8x128xi1>, vector<8x128xf32>
    %c0_8 = arith.constant 0 : index
    %c0_9 = arith.constant 0 : index
    %14 = vector.load %arg4[%c0_8, %c0_9] : memref<128x128xf32, #tpu.memory_space<vmem>>, vector<128x128xf32>
    %cst_10 = arith.constant dense<0.000000e+00> : vector<8x128xf32>
    %15 = tpu.matmul %13, %14, %cst_10 {dimension_numbers = #tpu.dot_dimension_numbers<[1], [0], [0], [1], [0, 0, 1, 1], [], []>} : vector<8x128xf32>, vector<128x128xf32>, vector<8x128xf32> -> vector<8x128xf32>
    %c0_11 = arith.constant 0 : index
    %c0_12 = arith.constant 0 : index
    %16 = vector.load %arg5[%c0_11, %c0_12] : memref<1x128xf32, #tpu.memory_space<vmem>>, vector<1x128xf32>
    %17 = vector.broadcast %16 : vector<1x128xf32> to vector<8x128xf32>
    %18 = arith.addf %15, %17 : vector<8x128xf32>
    %cst_13 = arith.constant 0.000000e+00 : f32
    %19 = vector.broadcast %cst_13 : f32 to vector<8x128xf32>
    %20 = arith.minimumf %18, %19 : vector<8x128xf32>
    %cst_14 = arith.constant 0.000000e+00 : f32
    %21 = vector.broadcast %cst_14 : f32 to vector<8x128xf32>
    %22 = arith.cmpf ogt, %18, %21 : vector<8x128xf32>
    %23 = math.exp %20 : vector<8x128xf32>
    %cst_15 = arith.constant 1.000000e+00 : f32
    %24 = vector.broadcast %cst_15 : f32 to vector<8x128xf32>
    %25 = arith.subf %23, %24 : vector<8x128xf32>
    %26 = arith.select %22, %18, %25 : vector<8x128xi1>, vector<8x128xf32>
    %c0_16 = arith.constant 0 : index
    %c0_17 = arith.constant 0 : index
    %27 = vector.load %arg6[%c0_16, %c0_17] : memref<128x128xf32, #tpu.memory_space<vmem>>, vector<128x128xf32>
    %cst_18 = arith.constant dense<0.000000e+00> : vector<8x128xf32>
    %28 = tpu.matmul %26, %27, %cst_18 {dimension_numbers = #tpu.dot_dimension_numbers<[1], [0], [0], [1], [0, 0, 1, 1], [], []>} : vector<8x128xf32>, vector<128x128xf32>, vector<8x128xf32> -> vector<8x128xf32>
    %c0_19 = arith.constant 0 : index
    %c0_20 = arith.constant 0 : index
    %29 = vector.load %arg7[%c0_19, %c0_20] : memref<1x128xf32, #tpu.memory_space<vmem>>, vector<1x128xf32>
    %30 = vector.broadcast %29 : vector<1x128xf32> to vector<8x128xf32>
    %31 = arith.addf %28, %30 : vector<8x128xf32>
    %c0_21 = arith.constant 0 : index
    %c0_22 = arith.constant 0 : index
    %32 = vector.load %arg8[%c0_21, %c0_22] : memref<8x128xf32, #tpu.memory_space<vmem>>, vector<8x128xf32>
    tpu.vector_store %arg8[%c0_21, %c0_22], %31 {strides = array<i32>} : memref<8x128xf32, #tpu.memory_space<vmem>>, vector<8x128xf32>,
    return
  }
  func.func @transform_0(%arg0: i32) -> (i32, i32) {
    %c0_i32 = arith.constant 0 : i32
    %c0_i32_0 = arith.constant 0 : i32
    return %arg0, %c0_i32 : i32, i32
  }
  func.func @transform_1(%arg0: i32) -> (i32, i32) {
    %c0_i32 = arith.constant 0 : i32
    %c0_i32_0 = arith.constant 0 : i32
    %c0_i32_1 = arith.constant 0 : i32
    return %c0_i32, %c0_i32_0 : i32, i32
  }
  func.func @transform_2(%arg0: i32) -> (i32, i32) {
    %c0_i32 = arith.constant 0 : i32
    %c0_i32_0 = arith.constant 0 : i32
    %c0_i32_1 = arith.constant 0 : i32
    return %c0_i32, %c0_i32_0 : i32, i32
  }
  func.func @transform_3(%arg0: i32) -> (i32, i32) {
    %c0_i32 = arith.constant 0 : i32
    %c0_i32_0 = arith.constant 0 : i32
    %c0_i32_1 = arith.constant 0 : i32
    return %c0_i32, %c0_i32_0 : i32, i32
  }
  func.func @transform_4(%arg0: i32) -> (i32, i32) {
    %c0_i32 = arith.constant 0 : i32
    %c0_i32_0 = arith.constant 0 : i32
    %c0_i32_1 = arith.constant 0 : i32
    return %c0_i32, %c0_i32_0 : i32, i32
  }
  func.func @transform_5(%arg0: i32) -> (i32, i32) {
    %c0_i32 = arith.constant 0 : i32
    %c0_i32_0 = arith.constant 0 : i32
    %c0_i32_1 = arith.constant 0 : i32
    return %c0_i32, %c0_i32_0 : i32, i32
  }
  func.func @transform_6(%arg0: i32) -> (i32, i32) {
    %c0_i32 = arith.constant 0 : i32
    %c0_i32_0 = arith.constant 0 : i32
    %c0_i32_1 = arith.constant 0 : i32
    return %c0_i32, %c0_i32_0 : i32, i32
  }
  func.func @transform_7(%arg0: i32) -> (i32, i32) {
    %c0_i32 = arith.constant 0 : i32
    %c0_i32_0 = arith.constant 0 : i32
    return %arg0, %c0_i32 : i32, i32
  }
}

</mosaic_0001>

<llo_original>
// kernel: tpu_custom_call.1
$region0: #{tpu_custom_call.1}
  #allocation0 [shape = 'u32[]', space=smem, size = 0x4, offset = 0x4, fixed_abs, tag = 'smem constant byte address 0x4 - core index']
  #allocation1 [shape = 'u32[144,128]{1,0:T(1,128)}', space=vmem, size = 0x12000, scoped, tag = 'internal scratch']
  %s0 = inlined_call_operand.hbm [shape: f32[8,128], index: 0, kind: input, shape index: {}]
  %s1 = inlined_call_operand.hbm [shape: f32[128,128], index: 1, kind: input, shape index: {}]
  %s2 = inlined_call_operand.vmem [shape: f32[1,128], index: 2, kind: input, shape index: {}]
  %s3 = inlined_call_operand.hbm [shape: f32[128,128], index: 3, kind: input, shape index: {}]
  %s4 = inlined_call_operand.vmem [shape: f32[1,128], index: 4, kind: input, shape index: {}]
  %s5 = inlined_call_operand.hbm [shape: f32[128,128], index: 5, kind: input, shape index: {}]
  %s6 = inlined_call_operand.vmem [shape: f32[1,128], index: 6, kind: input, shape index: {}]
  %s7 = inlined_call_operand.hbm [shape: f32[8,128], index: 7, kind: output, shape index: {}]
  %s8 = sld [smem:[#allocation0]]
  $region54: #{tpu_custom_call.1} parent=0
    _
  %s10 = ssub.s32 1, %s8
  %s11 = scalar_select 0, %s10, %s8
  $region1: #{tpu_custom_call.1} parent=0
    #allocation2 [shape = 'u8[4096]{0}', space=vmem, size = 0x1000, scoped, tag = 'input window, operand 0, single buffered']
    #allocation3 [shape = 's32[1]{0}', space=sflag, size = 0x4, scoped, tag = 'scoped memory for tpu_custom_call.1']
    #allocation4 [shape = 's32[1]{0}', space=sflag, size = 0x4, scoped, tag = 'scoped memory for tpu_custom_call.1']
    #allocation5 [shape = 'u8[65536]{0}', space=vmem, size = 0x10000, scoped, tag = 'input window, operand 1, single buffered']
    #allocation6 [shape = 's32[1]{0}', space=sflag, size = 0x4, scoped, tag = 'scoped memory for tpu_custom_call.1']
    #allocation7 [shape = 'u8[65536]{0}', space=vmem, size = 0x10000, scoped, tag = 'input window, operand 3, single buffered']
    #allocation8 [shape = 'u8[65536]{0}', space=vmem, size = 0x10000, scoped, tag = 'input window, operand 5, single buffered']
    #allocation9 [shape = 's32[1]{0}', space=sflag, size = 0x4, scoped, tag = 'scoped memory for tpu_custom_call.1']
    #allocation10 [shape = 'u8[4096]{0}', space=vmem, size = 0x1000, scoped, tag = 'output window, operand 0, single buffered']
    %12 = vsyncpa [#allocation3], 0
    %13 = vsyncpa [#allocation6], 0
    %14 = vsyncpa [#allocation9], 0
    %15 = vsyncpa [#allocation4], 0
    // Predicated region
    $region2: #{tpu_custom_call.1} parent=1 // pred_check
      _
    $region3: #{tpu_custom_call.1} parent=1 // pred_check_branch
      %17 = sbr.rel (0) target = $region5
    $region4: #{tpu_custom_call.1} parent=1 // pred_region
      %s19 = ssub.s32 128, 128
      %20 = vsyncadd [#allocation3], %s19
      %s22 = sshll.u32 [#allocation2], 4
      %s23 = int_to_ptr.vmem [resolvable:$true] %s22
      %25 = dma.hbm_to_vmem [thread:$0]  %s0, 128, %s23, [#allocation3]
    $region5: #{tpu_custom_call.1} parent=1 // pred_fallthru
      _
    // Predicated region
    $region6: #{tpu_custom_call.1} parent=1 // pred_check
      _
    $region7: #{tpu_custom_call.1} parent=1 // pred_check_branch
      %27 = sbr.rel (0) target = $region9
    $region8: #{tpu_custom_call.1} parent=1 // pred_region
      %s29 = ssub.s32 2048, 2048
      %30 = vsyncadd [#allocation6], %s29
      %s31 = sshll.u32 [#allocation5], 4
      %s32 = int_to_ptr.vmem [resolvable:$true] %s31
      %37 = dma.hbm_to_vmem [thread:$0]  %s1, 2048, %s32, [#allocation6], 128, 128, 8
    $region9: #{tpu_custom_call.1} parent=1 // pred_fallthru
      _
    // Predicated region
    $region10: #{tpu_custom_call.1} parent=1 // pred_check
      _
    $region11: #{tpu_custom_call.1} parent=1 // pred_check_branch
      %39 = sbr.rel (0) target = $region13
    $region12: #{tpu_custom_call.1} parent=1 // pred_region
      _
    $region13: #{tpu_custom_call.1} parent=1 // pred_fallthru
      _
    // Predicated region
    $region14: #{tpu_custom_call.1} parent=1 // pred_check
      _
    $region15: #{tpu_custom_call.1} parent=1 // pred_check_branch
      %41 = sbr.rel (0) target = $region17
    $region16: #{tpu_custom_call.1} parent=1 // pred_region
      %s43 = ssub.s32 2048, 2048
      %44 = vsyncadd [#allocation6], %s43
      %s45 = sshll.u32 [#allocation7], 4
      %s46 = int_to_ptr.vmem [resolvable:$true] %s45
      %51 = dma.hbm_to_vmem [thread:$0]  %s3, 2048, %s46, [#allocation6], 128, 128, 8
    $region17: #{tpu_custom_call.1} parent=1 // pred_fallthru
      _
    // Predicated region
    $region18: #{tpu_custom_call.1} parent=1 // pred_check
      _
    $region19: #{tpu_custom_call.1} parent=1 // pred_check_branch
      %53 = sbr.rel (0) target = $region21
    $region20: #{tpu_custom_call.1} parent=1 // pred_region
      _
    $region21: #{tpu_custom_call.1} parent=1 // pred_fallthru
      _
    // Predicated region
    $region22: #{tpu_custom_call.1} parent=1 // pred_check
      _
    $region23: #{tpu_custom_call.1} parent=1 // pred_check_branch
      %55 = sbr.rel (0) target = $region25
    $region24: #{tpu_custom_call.1} parent=1 // pred_region
      %s57 = ssub.s32 2048, 2048
      %58 = vsyncadd [#allocation9], %s57
      %s59 = sshll.u32 [#allocation8], 4
      %s60 = int_to_ptr.vmem [resolvable:$true] %s59
      %65 = dma.hbm_to_vmem [thread:$0]  %s5, 2048, %s60, [#allocation9], 128, 128, 8
    $region25: #{tpu_custom_call.1} parent=1 // pred_fallthru
      _
    // Predicated region
    $region26: #{tpu_custom_call.1} parent=1 // pred_check
      _
    $region27: #{tpu_custom_call.1} parent=1 // pred_check_branch
      %67 = sbr.rel (0) target = $region29
    $region28: #{tpu_custom_call.1} parent=1 // pred_region
      _
    $region29: #{tpu_custom_call.1} parent=1 // pred_fallthru
      _
    // Predicated region
    $region30: #{tpu_custom_call.1} parent=1 // pred_check
      _
    $region31: #{tpu_custom_call.1} parent=1 // pred_check_branch
      %69 = sbr.rel (0) target = $region33
    $region32: #{tpu_custom_call.1} parent=1 // pred_region
      %70 = dma.done [#allocation3], 128
    $region33: #{tpu_custom_call.1} parent=1 // pred_fallthru
      _
    // Predicated region
    $region34: #{tpu_custom_call.1} parent=1 // pred_check
      _
    $region35: #{tpu_custom_call.1} parent=1 // pred_check_branch
      %72 = sbr.rel (0) target = $region37
    $region36: #{tpu_custom_call.1} parent=1 // pred_region
      %73 = dma.done [#allocation6], 2048
    $region37: #{tpu_custom_call.1} parent=1 // pred_fallthru
      _
    // Predicated region
    $region38: #{tpu_custom_call.1} parent=1 // pred_check
      _
    $region39: #{tpu_custom_call.1} parent=1 // pred_check_branch
      %75 = sbr.rel (0) target = $region41
    $region40: #{tpu_custom_call.1} parent=1 // pred_region
      %76 = dma.done [#allocation6], 2048
    $region41: #{tpu_custom_call.1} parent=1 // pred_fallthru
      _
    // Predicated region
    $region42: #{tpu_custom_call.1} parent=1 // pred_check
      _
    $region43: #{tpu_custom_call.1} parent=1 // pred_check_branch
      %78 = sbr.rel (0) target = $region45
    $region44: #{tpu_custom_call.1} parent=1 // pred_region
      %79 = dma.done [#allocation9], 2048
    $region45: #{tpu_custom_call.1} parent=1 // pred_fallthru
      _
    %v80 = vld [vmem:[#allocation2] sm:$0xff]
    %v81 = vld [vmem:[#allocation5] sm:$0xff]
    %v82 = vld [vmem:[#allocation5 + $0x8] sm:$0xff]
    %v83 = vld [vmem:[#allocation5 + $0x10] sm:$0xff]
    %v84 = vld [vmem:[#allocation5 + $0x18] sm:$0xff]
    %v85 = vld [vmem:[#allocation5 + $0x20] sm:$0xff]
    %v86 = vld [vmem:[#allocation5 + $0x28] sm:$0xff]
    %v87 = vld [vmem:[#allocation5 + $0x30] sm:$0xff]
    %v88 = vld [vmem:[#allocation5 + $0x38] sm:$0xff]
    %v89 = vld [vmem:[#allocation5 + $0x40] sm:$0xff]
    %v90 = vld [vmem:[#allocation5 + $0x48] sm:$0xff]
    %v91 = vld [vmem:[#allocation5 + $0x50] sm:$0xff]
    %v92 = vld [vmem:[#allocation5 + $0x58] sm:$0xff]
    %v93 = vld [vmem:[#allocation5 + $0x60] sm:$0xff]
    %v94 = vld [vmem:[#allocation5 + $0x68] sm:$0xff]
    %v95 = vld [vmem:[#allocation5 + $0x70] sm:$0xff]
    %v96 = vld [vmem:[#allocation5 + $0x78] sm:$0xff]
    %v97 = vld [vmem:[%s2] sm:$0x1]
    %v99 = vlaneseq
    %v100 = vshrl.u32 %v99, 7
    %v101 = vsub.s32 0, %v100
    %v102 = vrot.slane %v97, %v101
    %104 = vmatprep.subr.mxu0 0.0
    %105 = vmatpush1.msra.mxu0 %v81
    %106 = vmatprep.subr.mxu0 0.0
    %107 = vmatpush1.msra.mxu0 %v82
    %108 = vmatprep.subr.mxu0 0.0
    %109 = vmatpush1.msra.mxu0 %v83
    %110 = vmatprep.subr.mxu0 0.0
    %111 = vmatpush1.msra.mxu0 %v84
    %112 = vmatprep.subr.mxu0 0.0
    %113 = vmatpush1.msra.mxu0 %v85
    %114 = vmatprep.subr.mxu0 0.0
    %115 = vmatpush1.msra.mxu0 %v86
    %116 = vmatprep.subr.mxu0 0.0
    %117 = vmatpush1.msra.mxu0 %v87
    %118 = vmatprep.subr.mxu0 0.0
    %119 = vmatpush1.msra.mxu0 %v88
    %120 = vmatprep.subr.mxu0 0.0
    %121 = vmatpush1.msra.mxu0 %v89
    %122 = vmatprep.subr.mxu0 0.0
    %123 = vmatpush1.msra.mxu0 %v90
    %124 = vmatprep.subr.mxu0 0.0
    %125 = vmatpush1.msra.mxu0 %v91
    %126 = vmatprep.subr.mxu0 0.0
    %127 = vmatpush1.msra.mxu0 %v92
    %128 = vmatprep.subr.mxu0 0.0
    %129 = vmatpush1.msra.mxu0 %v93
    %130 = vmatprep.subr.mxu0 0.0
    %131 = vmatpush1.msra.mxu0 %v94
    %132 = vmatprep.subr.mxu0 0.0
    %133 = vmatpush1.msra.mxu0 %v95
    %134 = vmatprep.subr.mxu0 0.0
    %135 = vmatpush1.msra.mxu0 %v96
    %136 = vmatprep.subr.mxu0 0.0
    %137 = vmatpush1.msra.mxu0 0.0
    %138 = vmatprep.subr.mxu0 0.0
    %139 = vmatpush1.msra.mxu0 0.0
    %140 = vmatprep.subr.mxu0 0.0
    %141 = vmatpush1.msra.mxu0 0.0
    %142 = vmatprep.subr.mxu0 0.0
    %143 = vmatpush1.msra.mxu0 0.0
    %144 = vmatprep.subr.mxu0 0.0
    %145 = vmatpush1.msra.mxu0 0.0
    %146 = vmatprep.subr.mxu0 0.0
    %147 = vmatpush1.msra.mxu0 0.0
    %148 = vmatprep.subr.mxu0 0.0
    %149 = vmatpush1.msra.mxu0 0.0
    %150 = vmatprep.subr.mxu0 0.0
    %151 = vmatpush1.msra.mxu0 0.0
    %152 = vmatprep.subr.mxu0 0.0
    %153 = vmatpush1.msra.mxu0 0.0
    %154 = vmatprep.subr.mxu0 0.0
    %155 = vmatpush1.msra.mxu0 0.0
    %156 = vmatprep.subr.mxu0 0.0
    %157 = vmatpush1.msra.mxu0 0.0
    %158 = vmatprep.subr.mxu0 0.0
    %159 = vmatpush1.msra.mxu0 0.0
    %160 = vmatprep.subr.mxu0 0.0
    %161 = vmatpush1.msra.mxu0 0.0
    %162 = vmatprep.subr.mxu0 0.0
    %163 = vmatpush1.msra.mxu0 0.0
    %164 = vmatprep.subr.mxu0 0.0
    %165 = vmatpush1.msra.mxu0 0.0
    %166 = vmatprep.subr.mxu0 0.0
    %167 = vmatpush1.msra.mxu0 0.0
    %168 = vmatprep.mubr.f32.mxu0 0.0
    %169 = vmatmul.mubr.f32.gmra.mrb[0].mxu0 %v80
    %v170 = vpop.f32.mrb[0].mxu0
    %v171 = vadd.f32 %v102, %v170
    %v172 = vpop.f32.mrb[0].mxu0
    %173 = vdwg.mxu0
    %v174 = vmin.f32 %v171, 0.0
    %vm175 = vcmp.gt.f32.partialorder %v171, 0.0
    %v176 = vmul.f32 %v174, 1.442695
    %v177 = vpow.pop %v176
    %v178 = vsub.f32 %v177, 1.0
    %v179 = vsel %vm175, %v171, %v178
    %v180 = vld [vmem:[#allocation7] sm:$0xff]
    %v181 = vld [vmem:[#allocation7 + $0x8] sm:$0xff]
    %v182 = vld [vmem:[#allocation7 + $0x10] sm:$0xff]
    %v183 = vld [vmem:[#allocation7 + $0x18] sm:$0xff]
    %v184 = vld [vmem:[#allocation7 + $0x20] sm:$0xff]
    %v185 = vld [vmem:[#allocation7 + $0x28] sm:$0xff]
    %v186 = vld [vmem:[#allocation7 + $0x30] sm:$0xff]
    %v187 = vld [vmem:[#allocation7 + $0x38] sm:$0xff]
    %v188 = vld [vmem:[#allocation7 + $0x40] sm:$0xff]
    %v189 = vld [vmem:[#allocation7 + $0x48] sm:$0xff]
    %v190 = vld [vmem:[#allocation7 + $0x50] sm:$0xff]
    %v191 = vld [vmem:[#allocation7 + $0x58] sm:$0xff]
    %v192 = vld [vmem:[#allocation7 + $0x60] sm:$0xff]
    %v193 = vld [vmem:[#allocation7 + $0x68] sm:$0xff]
    %v194 = vld [vmem:[#allocation7 + $0x70] sm:$0xff]
    %v195 = vld [vmem:[#allocation7 + $0x78] sm:$0xff]
    %v196 = vld [vmem:[%s4] sm:$0x1]
    %v198 = vlaneseq
    %v199 = vshrl.u32 %v198, 7
    %v200 = vsub.s32 0, %v199
    %v201 = vrot.slane %v196, %v200
    %203 = vmatprep.subr.mxu0 0.0
    %204 = vmatpush1.msra.mxu0 %v180
    %205 = vmatprep.subr.mxu0 0.0
    %206 = vmatpush1.msra.mxu0 %v181
    %207 = vmatprep.subr.mxu0 0.0
    %208 = vmatpush1.msra.mxu0 %v182
    %209 = vmatprep.subr.mxu0 0.0
    %210 = vmatpush1.msra.mxu0 %v183
    %211 = vmatprep.subr.mxu0 0.0
    %212 = vmatpush1.msra.mxu0 %v184
    %213 = vmatprep.subr.mxu0 0.0
    %214 = vmatpush1.msra.mxu0 %v185
    %215 = vmatprep.subr.mxu0 0.0
    %216 = vmatpush1.msra.mxu0 %v186
    %217 = vmatprep.subr.mxu0 0.0
    %218 = vmatpush1.msra.mxu0 %v187
    %219 = vmatprep.subr.mxu0 0.0
    %220 = vmatpush1.msra.mxu0 %v188
    %221 = vmatprep.subr.mxu0 0.0
    %222 = vmatpush1.msra.mxu0 %v189
    %223 = vmatprep.subr.mxu0 0.0
    %224 = vmatpush1.msra.mxu0 %v190
    %225 = vmatprep.subr.mxu0 0.0
    %226 = vmatpush1.msra.mxu0 %v191
    %227 = vmatprep.subr.mxu0 0.0
    %228 = vmatpush1.msra.mxu0 %v192
    %229 = vmatprep.subr.mxu0 0.0
    %230 = vmatpush1.msra.mxu0 %v193
    %231 = vmatprep.subr.mxu0 0.0
    %232 = vmatpush1.msra.mxu0 %v194
    %233 = vmatprep.subr.mxu0 0.0
    %234 = vmatpush1.msra.mxu0 %v195
    %235 = vmatprep.subr.mxu0 0.0
    %236 = vmatpush1.msra.mxu0 0.0
    %237 = vmatprep.subr.mxu0 0.0
    %238 = vmatpush1.msra.mxu0 0.0
    %239 = vmatprep.subr.mxu0 0.0
    %240 = vmatpush1.msra.mxu0 0.0
    %241 = vmatprep.subr.mxu0 0.0
    %242 = vmatpush1.msra.mxu0 0.0
    %243 = vmatprep.subr.mxu0 0.0
    %244 = vmatpush1.msra.mxu0 0.0
    %245 = vmatprep.subr.mxu0 0.0
    %246 = vmatpush1.msra.mxu0 0.0
    %247 = vmatprep.subr.mxu0 0.0
    %248 = vmatpush1.msra.mxu0 0.0
    %249 = vmatprep.subr.mxu0 0.0
    %250 = vmatpush1.msra.mxu0 0.0
    %251 = vmatprep.subr.mxu0 0.0
    %252 = vmatpush1.msra.mxu0 0.0
    %253 = vmatprep.subr.mxu0 0.0
    %254 = vmatpush1.msra.mxu0 0.0
    %255 = vmatprep.subr.mxu0 0.0
    %256 = vmatpush1.msra.mxu0 0.0
    %257 = vmatprep.subr.mxu0 0.0
    %258 = vmatpush1.msra.mxu0 0.0
    %259 = vmatprep.subr.mxu0 0.0
    %260 = vmatpush1.msra.mxu0 0.0
    %261 = vmatprep.subr.mxu0 0.0
    %262 = vmatpush1.msra.mxu0 0.0
    %263 = vmatprep.subr.mxu0 0.0
    %264 = vmatpush1.msra.mxu0 0.0
    %265 = vmatprep.subr.mxu0 0.0
    %266 = vmatpush1.msra.mxu0 0.0
    %267 = vmatprep.mubr.f32.mxu0 0.0
    %268 = vmatmul.mubr.f32.gmra.mrb[0].mxu0 %v179
    %v269 = vpop.f32.mrb[0].mxu0
    %v270 = vadd.f32 %v201, %v269
    %v271 = vpop.f32.mrb[0].mxu0
    %272 = vdwg.mxu0
    %v273 = vmin.f32 %v270, 0.0
    %vm274 = vcmp.gt.f32.partialorder %v270, 0.0
    %v275 = vmul.f32 %v273, 1.442695
    %v276 = vpow.pop %v275
    %v277 = vsub.f32 %v276, 1.0
    %v278 = vsel %vm274, %v270, %v277
    %v279 = vld [vmem:[#allocation8] sm:$0xff]
    %v280 = vld [vmem:[#allocation8 + $0x8] sm:$0xff]
    %v281 = vld [vmem:[#allocation8 + $0x10] sm:$0xff]
    %v282 = vld [vmem:[#allocation8 + $0x18] sm:$0xff]
    %v283 = vld [vmem:[#allocation8 + $0x20] sm:$0xff]
    %v284 = vld [vmem:[#allocation8 + $0x28] sm:$0xff]
    %v285 = vld [vmem:[#allocation8 + $0x30] sm:$0xff]
    %v286 = vld [vmem:[#allocation8 + $0x38] sm:$0xff]
    %v287 = vld [vmem:[#allocation8 + $0x40] sm:$0xff]
    %v288 = vld [vmem:[#allocation8 + $0x48] sm:$0xff]
    %v289 = vld [vmem:[#allocation8 + $0x50] sm:$0xff]
    %v290 = vld [vmem:[#allocation8 + $0x58] sm:$0xff]
    %v291 = vld [vmem:[#allocation8 + $0x60] sm:$0xff]
    %v292 = vld [vmem:[#allocation8 + $0x68] sm:$0xff]
    %v293 = vld [vmem:[#allocation8 + $0x70] sm:$0xff]
    %v294 = vld [vmem:[#allocation8 + $0x78] sm:$0xff]
    %v295 = vld [vmem:[%s6] sm:$0x1]
    %v297 = vlaneseq
    %v298 = vshrl.u32 %v297, 7
    %v299 = vsub.s32 0, %v298
    %v300 = vrot.slane %v295, %v299
    %302 = vmatprep.subr.mxu0 0.0
    %303 = vmatpush1.msra.mxu0 %v279
    %304 = vmatprep.subr.mxu0 0.0
    %305 = vmatpush1.msra.mxu0 %v280
    %306 = vmatprep.subr.mxu0 0.0
    %307 = vmatpush1.msra.mxu0 %v281
    %308 = vmatprep.subr.mxu0 0.0
    %309 = vmatpush1.msra.mxu0 %v282
    %310 = vmatprep.subr.mxu0 0.0
    %311 = vmatpush1.msra.mxu0 %v283
    %312 = vmatprep.subr.mxu0 0.0
    %313 = vmatpush1.msra.mxu0 %v284
    %314 = vmatprep.subr.mxu0 0.0
    %315 = vmatpush1.msra.mxu0 %v285
    %316 = vmatprep.subr.mxu0 0.0
    %317 = vmatpush1.msra.mxu0 %v286
    %318 = vmatprep.subr.mxu0 0.0
    %319 = vmatpush1.msra.mxu0 %v287
    %320 = vmatprep.subr.mxu0 0.0
    %321 = vmatpush1.msra.mxu0 %v288
    %322 = vmatprep.subr.mxu0 0.0
    %323 = vmatpush1.msra.mxu0 %v289
    %324 = vmatprep.subr.mxu0 0.0
    %325 = vmatpush1.msra.mxu0 %v290
    %326 = vmatprep.subr.mxu0 0.0
    %327 = vmatpush1.msra.mxu0 %v291
    %328 = vmatprep.subr.mxu0 0.0
    %329 = vmatpush1.msra.mxu0 %v292
    %330 = vmatprep.subr.mxu0 0.0
    %331 = vmatpush1.msra.mxu0 %v293
    %332 = vmatprep.subr.mxu0 0.0
    %333 = vmatpush1.msra.mxu0 %v294
    %334 = vmatprep.subr.mxu0 0.0
    %335 = vmatpush1.msra.mxu0 0.0
    %336 = vmatprep.subr.mxu0 0.0
    %337 = vmatpush1.msra.mxu0 0.0
    %338 = vmatprep.subr.mxu0 0.0
    %339 = vmatpush1.msra.mxu0 0.0
    %340 = vmatprep.subr.mxu0 0.0
    %341 = vmatpush1.msra.mxu0 0.0
    %342 = vmatprep.subr.mxu0 0.0
    %343 = vmatpush1.msra.mxu0 0.0
    %344 = vmatprep.subr.mxu0 0.0
    %345 = vmatpush1.msra.mxu0 0.0
    %346 = vmatprep.subr.mxu0 0.0
    %347 = vmatpush1.msra.mxu0 0.0
    %348 = vmatprep.subr.mxu0 0.0
    %349 = vmatpush1.msra.mxu0 0.0
    %350 = vmatprep.subr.mxu0 0.0
    %351 = vmatpush1.msra.mxu0 0.0
    %352 = vmatprep.subr.mxu0 0.0
    %353 = vmatpush1.msra.mxu0 0.0
    %354 = vmatprep.subr.mxu0 0.0
    %355 = vmatpush1.msra.mxu0 0.0
    %356 = vmatprep.subr.mxu0 0.0
    %357 = vmatpush1.msra.mxu0 0.0
    %358 = vmatprep.subr.mxu0 0.0
    %359 = vmatpush1.msra.mxu0 0.0
    %360 = vmatprep.subr.mxu0 0.0
    %361 = vmatpush1.msra.mxu0 0.0
    %362 = vmatprep.subr.mxu0 0.0
    %363 = vmatpush1.msra.mxu0 0.0
    %364 = vmatprep.subr.mxu0 0.0
    %365 = vmatpush1.msra.mxu0 0.0
    %366 = vmatprep.mubr.f32.mxu0 0.0
    %367 = vmatmul.mubr.f32.gmra.mrb[0].mxu0 %v278
    %v368 = vpop.f32.mrb[0].mxu0
    %v369 = vadd.f32 %v300, %v368
    %v370 = vpop.f32.mrb[0].mxu0
    %371 = vdwg.mxu0
    %372 = vst [vmem:[#allocation10] sm:$0xff] %v369
    // Predicated region
    $region46: #{tpu_custom_call.1} parent=1 // pred_check
      _
    $region47: #{tpu_custom_call.1} parent=1 // pred_check_branch
      %374 = sbr.rel (0) target = $region49
    $region48: #{tpu_custom_call.1} parent=1 // pred_region
      %s376 = ssub.s32 128, 128
      %377 = vsyncadd [#allocation4], %s376
      %s379 = sshll.u32 [#allocation10], 4
      %s380 = int_to_ptr.vmem [resolvable:$true] %s379
      %382 = dma.vmem_to_hbm [thread:$0]  %s380, 128, %s7, [#allocation4]
    $region49: #{tpu_custom_call.1} parent=1 // pred_fallthru
      _
    // Predicated region
    $region50: #{tpu_custom_call.1} parent=1 // pred_check
      _
    $region51: #{tpu_custom_call.1} parent=1 // pred_check_branch
      %384 = sbr.rel (0) target = $region53
    $region52: #{tpu_custom_call.1} parent=1 // pred_region
      %385 = dma.done [#allocation4], 128
    $region53: #{tpu_custom_call.1} parent=1 // pred_fallthru
      _
    %386 = vsyncpa [#allocation3], 1
    %387 = vsyncpa [#allocation6], 1
    %388 = vsyncpa [#allocation9], 1
    %389 = vsyncpa [#allocation4], 1

// kernel: tpu_custom_call.1
$region0: #{tpu_custom_call.1}
  #allocation0 [shape = 'u32[]', space=smem, size = 0x4, offset = 0x4, fixed_abs, tag = 'smem constant byte address 0x4 - core index']
  #allocation1 [shape = 'u32[144,128]{1,0:T(1,128)}', space=vmem, size = 0x12000, scoped, tag = 'internal scratch']
  %s0 = inlined_call_operand.hbm [shape: f32[8,128], index: 0, kind: input, shape index: {}]
  %s1 = inlined_call_operand.hbm [shape: f32[128,128], index: 1, kind: input, shape index: {}]
  %s2 = inlined_call_operand.vmem [shape: f32[1,128], index: 2, kind: input, shape index: {}]
  %s3 = inlined_call_operand.hbm [shape: f32[128,128], index: 3, kind: input, shape index: {}]
  %s4 = inlined_call_operand.vmem [shape: f32[1,128], index: 4, kind: input, shape index: {}]
  %s5 = inlined_call_operand.hbm [shape: f32[128,128], index: 5, kind: input, shape index: {}]
  %s6 = inlined_call_operand.vmem [shape: f32[1,128], index: 6, kind: input, shape index: {}]
  %s7 = inlined_call_operand.hbm [shape: f32[8,128], index: 7, kind: output, shape index: {}]
  %s8 = sld [smem:[#allocation0]]
  $region54: #{tpu_custom_call.1} parent=0
    _
  %s10 = ssub.s32 1, %s8
  %s11 = scalar_select 0, %s10, %s8
  $region1: #{tpu_custom_call.1} parent=0
    #allocation2 [shape = 'u8[4096]{0}', space=vmem, size = 0x1000, scoped, tag = 'input window, operand 0, single buffered']
    #allocation3 [shape = 's32[1]{0}', space=sflag, size = 0x4, scoped, tag = 'scoped memory for tpu_custom_call.1']
    #allocation4 [shape = 's32[1]{0}', space=sflag, size = 0x4, scoped, tag = 'scoped memory for tpu_custom_call.1']
    #allocation5 [shape = 'u8[65536]{0}', space=vmem, size = 0x10000, scoped, tag = 'input window, operand 1, single buffered']
    #allocation6 [shape = 's32[1]{0}', space=sflag, size = 0x4, scoped, tag = 'scoped memory for tpu_custom_call.1']
    #allocation7 [shape = 'u8[65536]{0}', space=vmem, size = 0x10000, scoped, tag = 'input window, operand 3, single buffered']
    #allocation8 [shape = 'u8[65536]{0}', space=vmem, size = 0x10000, scoped, tag = 'input window, operand 5, single buffered']
    #allocation9 [shape = 's32[1]{0}', space=sflag, size = 0x4, scoped, tag = 'scoped memory for tpu_custom_call.1']
    #allocation10 [shape = 'u8[4096]{0}', space=vmem, size = 0x1000, scoped, tag = 'output window, operand 0, single buffered']
    %12 = vsyncpa [#allocation3], 0
    %13 = vsyncpa [#allocation6], 0
    %14 = vsyncpa [#allocation9], 0
    %15 = vsyncpa [#allocation4], 0
    // Predicated region
    $region2: #{tpu_custom_call.1} parent=1 // pred_check
      _
    $region3: #{tpu_custom_call.1} parent=1 // pred_check_branch
      %17 = sbr.rel (0) target = $region5
    $region4: #{tpu_custom_call.1} parent=1 // pred_region
      %s19 = ssub.s32 128, 128
      %20 = vsyncadd [#allocation3], %s19
      %s22 = sshll.u32 [#allocation2], 4
      %s23 = int_to_ptr.vmem [resolvable:$true] %s22
      %25 = dma.hbm_to_vmem [thread:$0]  %s0, 128, %s23, [#allocation3]
    $region5: #{tpu_custom_call.1} parent=1 // pred_fallthru
      _
    // Predicated region
    $region6: #{tpu_custom_call.1} parent=1 // pred_check
      _
    $region7: #{tpu_custom_call.1} parent=1 // pred_check_branch
      %27 = sbr.rel (0) target = $region9
    $region8: #{tpu_custom_call.1} parent=1 // pred_region
      %s29 = ssub.s32 2048, 2048
      %30 = vsyncadd [#allocation6], %s29
      %s31 = sshll.u32 [#allocation5], 4
      %s32 = int_to_ptr.vmem [resolvable:$true] %s31
      %37 = dma.hbm_to_vmem [thread:$0]  %s1, 2048, %s32, [#allocation6], 128, 128, 8
    $region9: #{tpu_custom_call.1} parent=1 // pred_fallthru
      _
    // Predicated region
    $region10: #{tpu_custom_call.1} parent=1 // pred_check
      _
    $region11: #{tpu_custom_call.1} parent=1 // pred_check_branch
      %39 = sbr.rel (0) target = $region13
    $region12: #{tpu_custom_call.1} parent=1 // pred_region
      _
    $region13: #{tpu_custom_call.1} parent=1 // pred_fallthru
      _
    // Predicated region
    $region14: #{tpu_custom_call.1} parent=1 // pred_check
      _
    $region15: #{tpu_custom_call.1} parent=1 // pred_check_branch
      %41 = sbr.rel (0) target = $region17
    $region16: #{tpu_custom_call.1} parent=1 // pred_region
      %s43 = ssub.s32 2048, 2048
      %44 = vsyncadd [#allocation6], %s43
      %s45 = sshll.u32 [#allocation7], 4
      %s46 = int_to_ptr.vmem [resolvable:$true] %s45
      %51 = dma.hbm_to_vmem [thread:$0]  %s3, 2048, %s46, [#allocation6], 128, 128, 8
    $region17: #{tpu_custom_call.1} parent=1 // pred_fallthru
      _
    // Predicated region
    $region18: #{tpu_custom_call.1} parent=1 // pred_check
      _
    $region19: #{tpu_custom_call.1} parent=1 // pred_check_branch
      %53 = sbr.rel (0) target = $region21
    $region20: #{tpu_custom_call.1} parent=1 // pred_region
      _
    $region21: #{tpu_custom_call.1} parent=1 // pred_fallthru
      _
    // Predicated region
    $region22: #{tpu_custom_call.1} parent=1 // pred_check
      _
    $region23: #{tpu_custom_call.1} parent=1 // pred_check_branch
      %55 = sbr.rel (0) target = $region25
    $region24: #{tpu_custom_call.1} parent=1 // pred_region
      %s57 = ssub.s32 2048, 2048
      %58 = vsyncadd [#allocation9], %s57
      %s59 = sshll.u32 [#allocation8], 4
      %s60 = int_to_ptr.vmem [resolvable:$true] %s59
      %65 = dma.hbm_to_vmem [thread:$0]  %s5, 2048, %s60, [#allocation9], 128, 128, 8
    $region25: #{tpu_custom_call.1} parent=1 // pred_fallthru
      _
    // Predicated region
    $region26: #{tpu_custom_call.1} parent=1 // pred_check
      _
    $region27: #{tpu_custom_call.1} parent=1 // pred_check_branch
      %67 = sbr.rel (0) target = $region29
    $region28: #{tpu_custom_call.1} parent=1 // pred_region
      _
    $region29: #{tpu_custom_call.1} parent=1 // pred_fallthru
      _
    // Predicated region
    $region30: #{tpu_custom_call.1} parent=1 // pred_check
      _
    $region31: #{tpu_custom_call.1} parent=1 // pred_check_branch
      %69 = sbr.rel (0) target = $region33
    $region32: #{tpu_custom_call.1} parent=1 // pred_region
      %70 = dma.done [#allocation3], 128
    $region33: #{tpu_custom_call.1} parent=1 // pred_fallthru
      _
    // Predicated region
    $region34: #{tpu_custom_call.1} parent=1 // pred_check
      _
    $region35: #{tpu_custom_call.1} parent=1 // pred_check_branch
      %72 = sbr.rel (0) target = $region37
    $region36: #{tpu_custom_call.1} parent=1 // pred_region
      %73 = dma.done [#allocation6], 2048
    $region37: #{tpu_custom_call.1} parent=1 // pred_fallthru
      _
    // Predicated region
    $region38: #{tpu_custom_call.1} parent=1 // pred_check
      _
    $region39: #{tpu_custom_call.1} parent=1 // pred_check_branch
      %75 = sbr.rel (0) target = $region41
    $region40: #{tpu_custom_call.1} parent=1 // pred_region
      %76 = dma.done [#allocation6], 2048
    $region41: #{tpu_custom_call.1} parent=1 // pred_fallthru
      _
    // Predicated region
    $region42: #{tpu_custom_call.1} parent=1 // pred_check
      _
    $region43: #{tpu_custom_call.1} parent=1 // pred_check_branch
      %78 = sbr.rel (0) target = $region45
    $region44: #{tpu_custom_call.1} parent=1 // pred_region
      %79 = dma.done [#allocation9], 2048
    $region45: #{tpu_custom_call.1} parent=1 // pred_fallthru
      _
    %v80 = vld [vmem:[#allocation2] sm:$0xff]
    %v81 = vld [vmem:[#allocation5] sm:$0xff]
    %v82 = vld [vmem:[#allocation5 + $0x8] sm:$0xff]
    %v83 = vld [vmem:[#allocation5 + $0x10] sm:$0xff]
    %v84 = vld [vmem:[#allocation5 + $0x18] sm:$0xff]
    %v85 = vld [vmem:[#allocation5 + $0x20] sm:$0xff]
    %v86 = vld [vmem:[#allocation5 + $0x28] sm:$0xff]
    %v87 = vld [vmem:[#allocation5 + $0x30] sm:$0xff]
    %v88 = vld [vmem:[#allocation5 + $0x38] sm:$0xff]
    %v89 = vld [vmem:[#allocation5 + $0x40] sm:$0xff]
    %v90 = vld [vmem:[#allocation5 + $0x48] sm:$0xff]
    %v91 = vld [vmem:[#allocation5 + $0x50] sm:$0xff]
    %v92 = vld [vmem:[#allocation5 + $0x58] sm:$0xff]
    %v93 = vld [vmem:[#allocation5 + $0x60] sm:$0xff]
    %v94 = vld [vmem:[#allocation5 + $0x68] sm:$0xff]
    %v95 = vld [vmem:[#allocation5 + $0x70] sm:$0xff]
    %v96 = vld [vmem:[#allocation5 + $0x78] sm:$0xff]
    %v97 = vld [vmem:[%s2] sm:$0x1]
    %v99 = vlaneseq
    %v100 = vshrl.u32 %v99, 7
    %v101 = vsub.s32 0, %v100
    %v102 = vrot.slane %v97, %v101
    %104 = vmatprep.subr.mxu0 0.0
    %105 = vmatpush1.msra.mxu0 %v81
    %106 = vmatprep.subr.mxu0 0.0
    %107 = vmatpush1.msra.mxu0 %v82
    %108 = vmatprep.subr.mxu0 0.0
    %109 = vmatpush1.msra.mxu0 %v83
    %110 = vmatprep.subr.mxu0 0.0
    %111 = vmatpush1.msra.mxu0 %v84
    %112 = vmatprep.subr.mxu0 0.0
    %113 = vmatpush1.msra.mxu0 %v85
    %114 = vmatprep.subr.mxu0 0.0
    %115 = vmatpush1.msra.mxu0 %v86
    %116 = vmatprep.subr.mxu0 0.0
    %117 = vmatpush1.msra.mxu0 %v87
    %118 = vmatprep.subr.mxu0 0.0
    %119 = vmatpush1.msra.mxu0 %v88
    %120 = vmatprep.subr.mxu0 0.0
    %121 = vmatpush1.msra.mxu0 %v89
    %122 = vmatprep.subr.mxu0 0.0
    %123 = vmatpush1.msra.mxu0 %v90
    %124 = vmatprep.subr.mxu0 0.0
    %125 = vmatpush1.msra.mxu0 %v91
    %126 = vmatprep.subr.mxu0 0.0
    %127 = vmatpush1.msra.mxu0 %v92
    %128 = vmatprep.subr.mxu0 0.0
    %129 = vmatpush1.msra.mxu0 %v93
    %130 = vmatprep.subr.mxu0 0.0
    %131 = vmatpush1.msra.mxu0 %v94
    %132 = vmatprep.subr.mxu0 0.0
    %133 = vmatpush1.msra.mxu0 %v95
    %134 = vmatprep.subr.mxu0 0.0
    %135 = vmatpush1.msra.mxu0 %v96
    %136 = vmatprep.subr.mxu0 0.0
    %137 = vmatpush1.msra.mxu0 0.0
    %138 = vmatprep.subr.mxu0 0.0
    %139 = vmatpush1.msra.mxu0 0.0
    %140 = vmatprep.subr.mxu0 0.0
    %141 = vmatpush1.msra.mxu0 0.0
    %142 = vmatprep.subr.mxu0 0.0
    %143 = vmatpush1.msra.mxu0 0.0
    %144 = vmatprep.subr.mxu0 0.0
    %145 = vmatpush1.msra.mxu0 0.0
    %146 = vmatprep.subr.mxu0 0.0
    %147 = vmatpush1.msra.mxu0 0.0
    %148 = vmatprep.subr.mxu0 0.0
    %149 = vmatpush1.msra.mxu0 0.0
    %150 = vmatprep.subr.mxu0 0.0
    %151 = vmatpush1.msra.mxu0 0.0
    %152 = vmatprep.subr.mxu0 0.0
    %153 = vmatpush1.msra.mxu0 0.0
    %154 = vmatprep.subr.mxu0 0.0
    %155 = vmatpush1.msra.mxu0 0.0
    %156 = vmatprep.subr.mxu0 0.0
    %157 = vmatpush1.msra.mxu0 0.0
    %158 = vmatprep.subr.mxu0 0.0
    %159 = vmatpush1.msra.mxu0 0.0
    %160 = vmatprep.subr.mxu0 0.0
    %161 = vmatpush1.msra.mxu0 0.0
    %162 = vmatprep.subr.mxu0 0.0
    %163 = vmatpush1.msra.mxu0 0.0
    %164 = vmatprep.subr.mxu0 0.0
    %165 = vmatpush1.msra.mxu0 0.0
    %166 = vmatprep.subr.mxu0 0.0
    %167 = vmatpush1.msra.mxu0 0.0
    %168 = vmatprep.mubr.f32.mxu0 0.0
    %169 = vmatmul.mubr.f32.gmra.mrb[0].mxu0 %v80
    %v170 = vpop.f32.mrb[0].mxu0
    %v171 = vadd.f32 %v102, %v170
    %v172 = vpop.f32.mrb[0].mxu0
    %173 = vdwg.mxu0
    %v174 = vmin.f32 %v171, 0.0
    %vm175 = vcmp.gt.f32.partialorder %v171, 0.0
    %v176 = vmul.f32 %v174, 1.442695
    %v177 = vpow.pop %v176
    %v178 = vsub.f32 %v177, 1.0
    %v179 = vsel %vm175, %v171, %v178
    %v180 = vld [vmem:[#allocation7] sm:$0xff]
    %v181 = vld [vmem:[#allocation7 + $0x8] sm:$0xff]
    %v182 = vld [vmem:[#allocation7 + $0x10] sm:$0xff]
    %v183 = vld [vmem:[#allocation7 + $0x18] sm:$0xff]
    %v184 = vld [vmem:[#allocation7 + $0x20] sm:$0xff]
    %v185 = vld [vmem:[#allocation7 + $0x28] sm:$0xff]
    %v186 = vld [vmem:[#allocation7 + $0x30] sm:$0xff]
    %v187 = vld [vmem:[#allocation7 + $0x38] sm:$0xff]
    %v188 = vld [vmem:[#allocation7 + $0x40] sm:$0xff]
    %v189 = vld [vmem:[#allocation7 + $0x48] sm:$0xff]
    %v190 = vld [vmem:[#allocation7 + $0x50] sm:$0xff]
    %v191 = vld [vmem:[#allocation7 + $0x58] sm:$0xff]
    %v192 = vld [vmem:[#allocation7 + $0x60] sm:$0xff]
    %v193 = vld [vmem:[#allocation7 + $0x68] sm:$0xff]
    %v194 = vld [vmem:[#allocation7 + $0x70] sm:$0xff]
    %v195 = vld [vmem:[#allocation7 + $0x78] sm:$0xff]
    %v196 = vld [vmem:[%s4] sm:$0x1]
    %v198 = vlaneseq
    %v199 = vshrl.u32 %v198, 7
    %v200 = vsub.s32 0, %v199
    %v201 = vrot.slane %v196, %v200
    %203 = vmatprep.subr.mxu0 0.0
    %204 = vmatpush1.msra.mxu0 %v180
    %205 = vmatprep.subr.mxu0 0.0
    %206 = vmatpush1.msra.mxu0 %v181
    %207 = vmatprep.subr.mxu0 0.0
    %208 = vmatpush1.msra.mxu0 %v182
    %209 = vmatprep.subr.mxu0 0.0
    %210 = vmatpush1.msra.mxu0 %v183
    %211 = vmatprep.subr.mxu0 0.0
    %212 = vmatpush1.msra.mxu0 %v184
    %213 = vmatprep.subr.mxu0 0.0
    %214 = vmatpush1.msra.mxu0 %v185
    %215 = vmatprep.subr.mxu0 0.0
    %216 = vmatpush1.msra.mxu0 %v186
    %217 = vmatprep.subr.mxu0 0.0
    %218 = vmatpush1.msra.mxu0 %v187
    %219 = vmatprep.subr.mxu0 0.0
    %220 = vmatpush1.msra.mxu0 %v188
    %221 = vmatprep.subr.mxu0 0.0
    %222 = vmatpush1.msra.mxu0 %v189
    %223 = vmatprep.subr.mxu0 0.0
    %224 = vmatpush1.msra.mxu0 %v190
    %225 = vmatprep.subr.mxu0 0.0
    %226 = vmatpush1.msra.mxu0 %v191
    %227 = vmatprep.subr.mxu0 0.0
    %228 = vmatpush1.msra.mxu0 %v192
    %229 = vmatprep.subr.mxu0 0.0
    %230 = vmatpush1.msra.mxu0 %v193
    %231 = vmatprep.subr.mxu0 0.0
    %232 = vmatpush1.msra.mxu0 %v194
    %233 = vmatprep.subr.mxu0 0.0
    %234 = vmatpush1.msra.mxu0 %v195
    %235 = vmatprep.subr.mxu0 0.0
    %236 = vmatpush1.msra.mxu0 0.0
    %237 = vmatprep.subr.mxu0 0.0
    %238 = vmatpush1.msra.mxu0 0.0
    %239 = vmatprep.subr.mxu0 0.0
    %240 = vmatpush1.msra.mxu0 0.0
    %241 = vmatprep.subr.mxu0 0.0
    %242 = vmatpush1.msra.mxu0 0.0
    %243 = vmatprep.subr.mxu0 0.0
    %244 = vmatpush1.msra.mxu0 0.0
    %245 = vmatprep.subr.mxu0 0.0
    %246 = vmatpush1.msra.mxu0 0.0
    %247 = vmatprep.subr.mxu0 0.0
    %248 = vmatpush1.msra.mxu0 0.0
    %249 = vmatprep.subr.mxu0 0.0
    %250 = vmatpush1.msra.mxu0 0.0
    %251 = vmatprep.subr.mxu0 0.0
    %252 = vmatpush1.msra.mxu0 0.0
    %253 = vmatprep.subr.mxu0 0.0
    %254 = vmatpush1.msra.mxu0 0.0
    %255 = vmatprep.subr.mxu0 0.0
    %256 = vmatpush1.msra.mxu0 0.0
    %257 = vmatprep.subr.mxu0 0.0
    %258 = vmatpush1.msra.mxu0 0.0
    %259 = vmatprep.subr.mxu0 0.0
    %260 = vmatpush1.msra.mxu0 0.0
    %261 = vmatprep.subr.mxu0 0.0
    %262 = vmatpush1.msra.mxu0 0.0
    %263 = vmatprep.subr.mxu0 0.0
    %264 = vmatpush1.msra.mxu0 0.0
    %265 = vmatprep.subr.mxu0 0.0
    %266 = vmatpush1.msra.mxu0 0.0
    %267 = vmatprep.mubr.f32.mxu0 0.0
    %268 = vmatmul.mubr.f32.gmra.mrb[0].mxu0 %v179
    %v269 = vpop.f32.mrb[0].mxu0
    %v270 = vadd.f32 %v201, %v269
    %v271 = vpop.f32.mrb[0].mxu0
    %272 = vdwg.mxu0
    %v273 = vmin.f32 %v270, 0.0
    %vm274 = vcmp.gt.f32.partialorder %v270, 0.0
    %v275 = vmul.f32 %v273, 1.442695
    %v276 = vpow.pop %v275
    %v277 = vsub.f32 %v276, 1.0
    %v278 = vsel %vm274, %v270, %v277
    %v279 = vld [vmem:[#allocation8] sm:$0xff]
    %v280 = vld [vmem:[#allocation8 + $0x8] sm:$0xff]
    %v281 = vld [vmem:[#allocation8 + $0x10] sm:$0xff]
    %v282 = vld [vmem:[#allocation8 + $0x18] sm:$0xff]
    %v283 = vld [vmem:[#allocation8 + $0x20] sm:$0xff]
    %v284 = vld [vmem:[#allocation8 + $0x28] sm:$0xff]
    %v285 = vld [vmem:[#allocation8 + $0x30] sm:$0xff]
    %v286 = vld [vmem:[#allocation8 + $0x38] sm:$0xff]
    %v287 = vld [vmem:[#allocation8 + $0x40] sm:$0xff]
    %v288 = vld [vmem:[#allocation8 + $0x48] sm:$0xff]
    %v289 = vld [vmem:[#allocation8 + $0x50] sm:$0xff]
    %v290 = vld [vmem:[#allocation8 + $0x58] sm:$0xff]
    %v291 = vld [vmem:[#allocation8 + $0x60] sm:$0xff]
    %v292 = vld [vmem:[#allocation8 + $0x68] sm:$0xff]
    %v293 = vld [vmem:[#allocation8 + $0x70] sm:$0xff]
    %v294 = vld [vmem:[#allocation8 + $0x78] sm:$0xff]
    %v295 = vld [vmem:[%s6] sm:$0x1]
    %v297 = vlaneseq
    %v298 = vshrl.u32 %v297, 7
    %v299 = vsub.s32 0, %v298
    %v300 = vrot.slane %v295, %v299
    %302 = vmatprep.subr.mxu0 0.0
    %303 = vmatpush1.msra.mxu0 %v279
    %304 = vmatprep.subr.mxu0 0.0
    %305 = vmatpush1.msra.mxu0 %v280
    %306 = vmatprep.subr.mxu0 0.0
    %307 = vmatpush1.msra.mxu0 %v281
    %308 = vmatprep.subr.mxu0 0.0
    %309 = vmatpush1.msra.mxu0 %v282
    %310 = vmatprep.subr.mxu0 0.0
    %311 = vmatpush1.msra.mxu0 %v283
    %312 = vmatprep.subr.mxu0 0.0
    %313 = vmatpush1.msra.mxu0 %v284
    %314 = vmatprep.subr.mxu0 0.0
    %315 = vmatpush1.msra.mxu0 %v285
    %316 = vmatprep.subr.mxu0 0.0
    %317 = vmatpush1.msra.mxu0 %v286
    %318 = vmatprep.subr.mxu0 0.0
    %319 = vmatpush1.msra.mxu0 %v287
    %320 = vmatprep.subr.mxu0 0.0
    %321 = vmatpush1.msra.mxu0 %v288
    %322 = vmatprep.subr.mxu0 0.0
    %323 = vmatpush1.msra.mxu0 %v289
    %324 = vmatprep.subr.mxu0 0.0
    %325 = vmatpush1.msra.mxu0 %v290
    %326 = vmatprep.subr.mxu0 0.0
    %327 = vmatpush1.msra.mxu0 %v291
    %328 = vmatprep.subr.mxu0 0.0
    %329 = vmatpush1.msra.mxu0 %v292
    %330 = vmatprep.subr.mxu0 0.0
    %331 = vmatpush1.msra.mxu0 %v293
    %332 = vmatprep.subr.mxu0 0.0
    %333 = vmatpush1.msra.mxu0 %v294
    %334 = vmatprep.subr.mxu0 0.0
    %335 = vmatpush1.msra.mxu0 0.0
    %336 = vmatprep.subr.mxu0 0.0
    %337 = vmatpush1.msra.mxu0 0.0
    %338 = vmatprep.subr.mxu0 0.0
    %339 = vmatpush1.msra.mxu0 0.0
    %340 = vmatprep.subr.mxu0 0.0
    %341 = vmatpush1.msra.mxu0 0.0
    %342 = vmatprep.subr.mxu0 0.0
    %343 = vmatpush1.msra.mxu0 0.0
    %344 = vmatprep.subr.mxu0 0.0
    %345 = vmatpush1.msra.mxu0 0.0
    %346 = vmatprep.subr.mxu0 0.0
    %347 = vmatpush1.msra.mxu0 0.0
    %348 = vmatprep.subr.mxu0 0.0
    %349 = vmatpush1.msra.mxu0 0.0
    %350 = vmatprep.subr.mxu0 0.0
    %351 = vmatpush1.msra.mxu0 0.0
    %352 = vmatprep.subr.mxu0 0.0
    %353 = vmatpush1.msra.mxu0 0.0
    %354 = vmatprep.subr.mxu0 0.0
    %355 = vmatpush1.msra.mxu0 0.0
    %356 = vmatprep.subr.mxu0 0.0
    %357 = vmatpush1.msra.mxu0 0.0
    %358 = vmatprep.subr.mxu0 0.0
    %359 = vmatpush1.msra.mxu0 0.0
    %360 = vmatprep.subr.mxu0 0.0
    %361 = vmatpush1.msra.mxu0 0.0
    %362 = vmatprep.subr.mxu0 0.0
    %363 = vmatpush1.msra.mxu0 0.0
    %364 = vmatprep.subr.mxu0 0.0
    %365 = vmatpush1.msra.mxu0 0.0
    %366 = vmatprep.mubr.f32.mxu0 0.0
    %367 = vmatmul.mubr.f32.gmra.mrb[0].mxu0 %v278
    %v368 = vpop.f32.mrb[0].mxu0
    %v369 = vadd.f32 %v300, %v368
    %v370 = vpop.f32.mrb[0].mxu0
    %371 = vdwg.mxu0
    %372 = vst [vmem:[#allocation10] sm:$0xff] %v369
    // Predicated region
    $region46: #{tpu_custom_call.1} parent=1 // pred_check
      _
    $region47: #{tpu_custom_call.1} parent=1 // pred_check_branch
      %374 = sbr.rel (0) target = $region49
    $region48: #{tpu_custom_call.1} parent=1 // pred_region
      %s376 = ssub.s32 128, 128
      %377 = vsyncadd [#allocation4], %s376
      %s379 = sshll.u32 [#allocation10], 4
      %s380 = int_to_ptr.vmem [resolvable:$true] %s379
      %382 = dma.vmem_to_hbm [thread:$0]  %s380, 128, %s7, [#allocation4]
    $region49: #{tpu_custom_call.1} parent=1 // pred_fallthru
      _
    // Predicated region
    $region50: #{tpu_custom_call.1} parent=1 // pred_check
      _
    $region51: #{tpu_custom_call.1} parent=1 // pred_check_branch
      %384 = sbr.rel (0) target = $region53
    $region52: #{tpu_custom_call.1} parent=1 // pred_region
      %385 = dma.done [#allocation4], 128
    $region53: #{tpu_custom_call.1} parent=1 // pred_fallthru
      _
    %386 = vsyncpa [#allocation3], 1
    %387 = vsyncpa [#allocation6], 1
    %388 = vsyncpa [#allocation9], 1
    %389 = vsyncpa [#allocation4], 1

</llo_original>
